<compile_context>
chip_gen: v7x
topology: tpu7x:2x2x1
jax: 0.10.0
libtpu: 0.0.40
codegen_flags: <defaults>
</compile_context>

<pallas_src>
import functools
import math

import jax
import jax.numpy as jnp
from jax.experimental import pallas as pl
from jax.experimental.pallas import tpu as pltpu


_LANES = 128
_SUBLANES = 8
_BLOCK_BYTES = 4 * 1024 * 1024      # per input block; Pallas double-buffers (~8.5 MiB VMEM)
_MAX_PACK_BYTES = 512 * 1024        # cap on one packed row (k*D) so >= 8 rows fit a block


def _round_up(v, m):
    return ((v + m - 1) // m) * m


def _round_down(v, m):
    return (v // m) * m


# ---------------------------------------------------------------------------
# dim == -1 : mean over the last (lane) axis
# ---------------------------------------------------------------------------
def _mean_last_kernel(x_ref, o_ref, *, d, k, n_keep, compute_dtype):
    """x_ref: (tile_g, k*d) -- k original rows packed per lane-row.
       o_ref: (tile_g, k)   -- one mean per original row."""
    inv = 1.0 / float(n_keep)
    if k == 1:
        # Plain masked lane reduction (lane-aligned D / fallback path).
        x = x_ref[...].astype(jnp.float32)                       # (tile_g, d)
        if n_keep < d:
            col = jax.lax.broadcasted_iota(jnp.int32, x.shape, 1)
            x = jnp.where(col < n_keep, x, 0.0)
        s = jnp.sum(x, axis=-1, keepdims=True)                   # (tile_g, 1)
    else:
        # Segmented row-sum as a single MXU matmul against a static 0/1
        # selection matrix.  Column j of W selects the first n_keep elements
        # of packed segment j (lanes [j*d, j*d + n_keep)).  Built from iotas
        # (no vector int div/mod needed); a few vregs of work per grid step.
        kd = k * d
        src = jax.lax.broadcasted_iota(jnp.int32, (kd, k), 0)    # packed lane index
        seg = jax.lax.broadcasted_iota(jnp.int32, (kd, k), 1)    # original-row slot
        keep = (src >= seg * d) & (src < seg * d + n_keep)
        w = keep.astype(compute_dtype)                           # exact 0/1 weights
        # HIGHEST keeps f32 inputs at full f32 accuracy on the MXU; the mask
        # is 0/1 so bf16 inputs are exact with f32 accumulation.
        s = jnp.dot(x_ref[...].astype(compute_dtype), w,
                    precision=jax.lax.Precision.HIGHEST,
                    preferred_element_type=jnp.float32)          # (tile_g, k)
    o_ref[...] = (s * inv).astype(o_ref.dtype)


def _pick_pack_factor(n_rows, d, itemsize):
    """Pick a divisor k of n_rows so k*d lanes are as 128-aligned as possible."""
    if d % _LANES == 0 or n_rows <= 1:
        return 1
    max_k = min(n_rows, max(1, _MAX_PACK_BYTES // max(1, d * itemsize)), 1024)
    best_k = 1
    best_density = d / _round_up(d, _LANES)
    for k in range(2, max_k + 1):
        if n_rows % k:
            continue
        density = (k * d) / _round_up(k * d, _LANES)
        if density > best_density + 1e-9:
            best_k, best_density = k, density
        if best_density >= 1.0 - 1e-9:
            break
    return best_k


def _mean_last_axis(x, n_out):
    orig_shape = x.shape
    d = int(orig_shape[-1])
    n_keep = int(min(int(n_out), d))
    lead = orig_shape[:-1]
    r = int(math.prod(lead)) if lead else 1
    itemsize = jnp.dtype(x.dtype).itemsize

    k = _pick_pack_factor(r, d, itemsize)
    g = r // k
    kd = k * d
    x2d = x.reshape(g, kd)                       # free, contiguous reshape

    compute_dtype = jnp.bfloat16 if x.dtype == jnp.bfloat16 else jnp.float32

    row_bytes = kd * itemsize
    tile_g = max(_SUBLANES, _round_down(_BLOCK_BYTES // max(1, row_bytes), _SUBLANES))
    if tile_g >= g:
        tile_g = g                               # single / full-extent block is always legal
    grid = (pl.cdiv(g, tile_g),)                 # ragged edge handled by OOB masking

    out2d = pl.pallas_call(
        functools.partial(_mean_last_kernel, d=d, k=k, n_keep=n_keep,
                          compute_dtype=compute_dtype),
        out_shape=jax.ShapeDtypeStruct((g, k), x.dtype),
        grid=grid,
        in_specs=[pl.BlockSpec((tile_g, kd), lambda i: (i, 0))],
        out_specs=pl.BlockSpec((tile_g, k), lambda i: (i, 0)),
        compiler_params=pltpu.CompilerParams(
            # Row tiles are independent -> lets v7x shard across its two
            # TensorCores; harmless on single-TC v5e / v6e.
            dimension_semantics=("parallel",),
        ),
    )(x2d)

    return out2d.reshape(lead)


# ---------------------------------------------------------------------------
# dim != -1 : mean over a non-minor axis (sublane reduction, lane-dense I/O)
# ---------------------------------------------------------------------------
def _mean_axis_kernel(x_ref, o_ref, *, inv_m):
    x = x_ref[...].astype(jnp.float32)                           # (tile_b, m, tile_n)
    o_ref[...] = (jnp.sum(x, axis=1, keepdims=True) * inv_m).astype(o_ref.dtype)


def _mean_axis(x, axis):
    shape = x.shape
    b = int(math.prod(shape[:axis])) if axis > 0 else 1
    m = int(shape[axis])
    n = int(math.prod(shape[axis + 1:]))
    itemsize = jnp.dtype(x.dtype).itemsize
    x3d = x.reshape(b, m, n)                                      # free reshape

    slab_bytes = m * n * itemsize
    if slab_bytes <= _BLOCK_BYTES or n <= _LANES:
        tile_n = n
        tile_b = max(1, min(b, _BLOCK_BYTES // max(1, slab_bytes)))
    else:
        tile_b = 1
        cols_fit = _round_down(_BLOCK_BYTES // max(1, m * itemsize), _LANES)
        tile_n = n if cols_fit >= n else max(_LANES, cols_fit)
    grid = (pl.cdiv(b, tile_b), pl.cdiv(n, tile_n))

    out3d = pl.pallas_call(
        functools.partial(_mean_axis_kernel, inv_m=1.0 / float(m)),
        out_shape=jax.ShapeDtypeStruct((b, 1, n), x.dtype),
        grid=grid,
        in_specs=[pl.BlockSpec((tile_b, m, tile_n), lambda i, j: (i, 0, j))],
        out_specs=pl.BlockSpec((tile_b, 1, tile_n), lambda i, j: (i, 0, j)),
        compiler_params=pltpu.CompilerParams(
            dimension_semantics=("parallel", "parallel"),
        ),
    )(x3d)

    return out3d.reshape(shape[:axis] + shape[axis + 1:])


# ---------------------------------------------------------------------------
# Public entry point: MeanPooling.forward
# ---------------------------------------------------------------------------
def mean_pooling(x, n_out, dim=-1):
    """Pallas implementation of MeanPooling.forward: x[..., :n_out].mean(dim)."""
    nd = x.ndim
    ax = dim % nd
    if ax == nd - 1:
        # Slice axis == reduction axis: fold the :n_out slice into the kernel.
        return _mean_last_axis(x, n_out)
    # Reduction over a non-minor axis commutes with the trailing [:n_out]
    # slice: reduce the full array (no materialized input slice / transpose),
    # then slice the much smaller result.
    out = _mean_axis(x, ax)
    n_keep = min(int(n_out), int(x.shape[-1]))
    return out[..., :n_keep]


if __name__ == "__main__":
    key = jax.random.PRNGKey(0)
    n_out = 24
    # Small shape consistent with the module: (batch=2, seq=8, hidden=32),
    # pooling the first n_out=24 features over the last dim.
    x = jax.random.normal(key, (2, 8, 32), dtype=jnp.float32)

    out = jax.block_until_ready(mean_pooling(x, n_out=n_out, dim=-1))
    ref = jnp.mean(x[..., :n_out], axis=-1)
    assert out.shape == ref.shape
    assert out.dtype == x.dtype
    assert jnp.allclose(out, ref, atol=1e-5, rtol=1e-5), "mismatch vs reference (dim=-1)"

    # Also exercise the dim != -1 branch (sublane-reduction kernel).
    out2 = jax.block_until_ready(mean_pooling(x, n_out=n_out, dim=1))
    ref2 = jnp.mean(x[..., :n_out], axis=1)
    assert out2.shape == ref2.shape
    assert jnp.allclose(out2, ref2, atol=1e-5, rtol=1e-5), "mismatch vs reference (dim=1)"

    print("KERNEL_OK")
</pallas_src>

<mosaic_0001>
module attributes {stable_mosaic.version = 11 : i64} {
  func.func @_mean_last_kernel(%arg0: i32, %arg1: memref<4x128xf32, #tpu.memory_space<vmem>>, %arg2: memref<4x4xf32, #tpu.memory_space<vmem>>) attributes {dimension_semantics = [#tpu.dimension_semantics<parallel>], iteration_bounds = array<i64: 1>, scalar_prefetch = 0 : i64, scratch_operands = 0 : i64, tpu.core_type = #tpu.core_type<tc>, window_params = [{transform_indices = @transform_0, window_bounds = array<i64: 4, 128>}, {transform_indices = @transform_1, window_bounds = array<i64: 4, 4>}]} {
    %0 = tpu.iota {dimensions = array<i32: 0>} : vector<128x4xi32>
    %1 = tpu.iota {dimensions = array<i32: 1>} : vector<128x4xi32>
    %c32_i32 = arith.constant 32 : i32
    %2 = vector.broadcast %c32_i32 : i32 to vector<128x4xi32>
    %3 = arith.muli %1, %2 : vector<128x4xi32>
    %4 = arith.cmpi sge, %0, %3 : vector<128x4xi32>
    %c32_i32_0 = arith.constant 32 : i32
    %5 = vector.broadcast %c32_i32_0 : i32 to vector<128x4xi32>
    %6 = arith.muli %1, %5 : vector<128x4xi32>
    %c24_i32 = arith.constant 24 : i32
    %7 = vector.broadcast %c24_i32 : i32 to vector<128x4xi32>
    %8 = arith.addi %6, %7 : vector<128x4xi32>
    %9 = arith.cmpi slt, %0, %8 : vector<128x4xi32>
    %10 = arith.andi %4, %9 : vector<128x4xi1>
    %11 = arith.extui %10 : vector<128x4xi1> to vector<128x4xi32>
    %12 = arith.sitofp %11 : vector<128x4xi32> to vector<128x4xf32>
    %c0 = arith.constant 0 : index
    %c0_1 = arith.constant 0 : index
    %13 = vector.load %arg1[%c0, %c0_1] : memref<4x128xf32, #tpu.memory_space<vmem>>, vector<4x128xf32>
    %cst = arith.constant dense<0.000000e+00> : vector<4x4xf32>
    %14 = tpu.matmul %13, %12, %cst {dimension_numbers = #tpu.dot_dimension_numbers<[1], [0], [0], [1], [0, 0, 1, 1], [], []>, precision = #tpu.contract_precision<fp32>} : vector<4x128xf32>, vector<128x4xf32>, vector<4x4xf32> -> vector<4x4xf32>
    %cst_2 = arith.constant 0.0416666679 : f32
    %15 = vector.broadcast %cst_2 : f32 to vector<4x4xf32>
    %16 = arith.mulf %14, %15 : vector<4x4xf32>
    %c0_3 = arith.constant 0 : index
    %c0_4 = arith.constant 0 : index
    %17 = vector.load %arg2[%c0_3, %c0_4] : memref<4x4xf32, #tpu.memory_space<vmem>>, vector<4x4xf32>
    tpu.vector_store %arg2[%c0_3, %c0_4], %16 {strides = array<i32>} : memref<4x4xf32, #tpu.memory_space<vmem>>, vector<4x4xf32>,
    return
  }
  func.func @transform_0(%arg0: i32) -> (i32, i32) {
    %c0_i32 = arith.constant 0 : i32
    %c0_i32_0 = arith.constant 0 : i32
    return %arg0, %c0_i32 : i32, i32
  }
  func.func @transform_1(%arg0: i32) -> (i32, i32) {
    %c0_i32 = arith.constant 0 : i32
    %c0_i32_0 = arith.constant 0 : i32
    return %arg0, %c0_i32 : i32, i32
  }
}

</mosaic_0001>

<llo_original>
// kernel: tpu_custom_call.1
$region0: #{tpu_custom_call.1}
  #allocation0 [shape = 'u32[]', space=smem, size = 0x4, offset = 0x4, fixed_abs, tag = 'smem constant byte address 0x4 - core index']
  #allocation1 [shape = 'u32[144,128]{1,0:T(1,128)}', space=vmem, size = 0x12000, scoped, tag = 'internal scratch']
  %s0 = inlined_call_operand.hbm [shape: f32[4,128], index: 0, kind: input, shape index: {}]
  %s1 = inlined_call_operand.hbm [shape: f32[4,4], index: 1, kind: output, shape index: {}]
  %s2 = sld [smem:[#allocation0]]
  $region18: #{tpu_custom_call.1} parent=0
    _
  %s4 = ssub.s32 1, %s2
  %s5 = scalar_select 0, %s4, %s2
  $region1: #{tpu_custom_call.1} parent=0
    #allocation2 [shape = 'u8[2048]{0}', space=vmem, size = 0x800, scoped, tag = 'input window, operand 0, single buffered']
    #allocation3 [shape = 's32[1]{0}', space=sflag, size = 0x4, scoped, tag = 'scoped memory for tpu_custom_call.1']
    #allocation4 [shape = 's32[1]{0}', space=sflag, size = 0x4, scoped, tag = 'scoped memory for tpu_custom_call.1']
    #allocation5 [shape = 'u8[2048]{0}', space=vmem, size = 0x800, scoped, tag = 'output window, operand 0, single buffered']
    %6 = vsyncpa [#allocation3], 0
    %7 = vsyncpa [#allocation4], 0
    // Predicated region
    $region2: #{tpu_custom_call.1} parent=1 // pred_check
      _
    $region3: #{tpu_custom_call.1} parent=1 // pred_check_branch
      %9 = sbr.rel (0) target = $region5
    $region4: #{tpu_custom_call.1} parent=1 // pred_region
      %s11 = ssub.s32 64, 64
      %12 = vsyncadd [#allocation3], %s11
      %s14 = sshll.u32 [#allocation2], 4
      %s15 = int_to_ptr.vmem [resolvable:$true] %s14
      %17 = dma.hbm_to_vmem [thread:$0]  %s0, 64, %s15, [#allocation3]
    $region5: #{tpu_custom_call.1} parent=1 // pred_fallthru
      _
    // Predicated region
    $region6: #{tpu_custom_call.1} parent=1 // pred_check
      _
    $region7: #{tpu_custom_call.1} parent=1 // pred_check_branch
      %19 = sbr.rel (0) target = $region9
    $region8: #{tpu_custom_call.1} parent=1 // pred_region
      %20 = dma.done [#allocation3], 64
    $region9: #{tpu_custom_call.1} parent=1 // pred_fallthru
      _
    %v21 = vlaneseq
    %v22 = vshrl.u32 %v21, 7
    %v23 = vadd.s32 %v22, 8
    %v24 = vadd.s32 %v22, 16
    %v25 = vadd.s32 %v22, 24
    %v26 = vadd.s32 %v22, 32
    %v27 = vadd.s32 %v22, 40
    %v28 = vadd.s32 %v22, 48
    %v29 = vadd.s32 %v22, 56
    %v30 = vadd.s32 %v22, 64
    %v31 = vadd.s32 %v22, 72
    %v32 = vadd.s32 %v22, 80
    %v33 = vadd.s32 %v22, 88
    %v34 = vadd.s32 %v22, 96
    %v35 = vadd.s32 %v22, 104
    %v36 = vadd.s32 %v22, 112
    %v37 = vadd.s32 %v22, 120
    %v38 = vlaneseq
    %v39 = vand.u32 %v38, 127
    %v40 = vmul.u32 %v39, 32
    %vm41 = vcmp.ge.s32.totalorder %v22, %v40
    %vm42 = vcmp.ge.s32.totalorder %v23, %v40
    %vm43 = vcmp.ge.s32.totalorder %v24, %v40
    %vm44 = vcmp.ge.s32.totalorder %v25, %v40
    %vm45 = vcmp.ge.s32.totalorder %v26, %v40
    %vm46 = vcmp.ge.s32.totalorder %v27, %v40
    %vm47 = vcmp.ge.s32.totalorder %v28, %v40
    %vm48 = vcmp.ge.s32.totalorder %v29, %v40
    %vm49 = vcmp.ge.s32.totalorder %v30, %v40
    %vm50 = vcmp.ge.s32.totalorder %v31, %v40
    %vm51 = vcmp.ge.s32.totalorder %v32, %v40
    %vm52 = vcmp.ge.s32.totalorder %v33, %v40
    %vm53 = vcmp.ge.s32.totalorder %v34, %v40
    %vm54 = vcmp.ge.s32.totalorder %v35, %v40
    %vm55 = vcmp.ge.s32.totalorder %v36, %v40
    %vm56 = vcmp.ge.s32.totalorder %v37, %v40
    %v57 = vadd.s32 %v40, 24
    %vm58 = vcmp.lt.s32.totalorder %v22, %v57
    %vm59 = vcmp.lt.s32.totalorder %v23, %v57
    %vm60 = vcmp.lt.s32.totalorder %v24, %v57
    %vm61 = vcmp.lt.s32.totalorder %v25, %v57
    %vm62 = vcmp.lt.s32.totalorder %v26, %v57
    %vm63 = vcmp.lt.s32.totalorder %v27, %v57
    %vm64 = vcmp.lt.s32.totalorder %v28, %v57
    %vm65 = vcmp.lt.s32.totalorder %v29, %v57
    %vm66 = vcmp.lt.s32.totalorder %v30, %v57
    %vm67 = vcmp.lt.s32.totalorder %v31, %v57
    %vm68 = vcmp.lt.s32.totalorder %v32, %v57
    %vm69 = vcmp.lt.s32.totalorder %v33, %v57
    %vm70 = vcmp.lt.s32.totalorder %v34, %v57
    %vm71 = vcmp.lt.s32.totalorder %v35, %v57
    %vm72 = vcmp.lt.s32.totalorder %v36, %v57
    %vm73 = vcmp.lt.s32.totalorder %v37, %v57
    %vm74 = vmand %vm41, %vm58
    %vm75 = vmand %vm42, %vm59
    %vm76 = vmand %vm43, %vm60
    %vm77 = vmand %vm44, %vm61
    %vm78 = vmand %vm45, %vm62
    %vm79 = vmand %vm46, %vm63
    %vm80 = vmand %vm47, %vm64
    %vm81 = vmand %vm48, %vm65
    %vm82 = vmand %vm49, %vm66
    %vm83 = vmand %vm50, %vm67
    %vm84 = vmand %vm51, %vm68
    %vm85 = vmand %vm52, %vm69
    %vm86 = vmand %vm53, %vm70
    %vm87 = vmand %vm54, %vm71
    %vm88 = vmand %vm55, %vm72
    %vm89 = vmand %vm56, %vm73
    %v90 = vsel %vm74, 1, 0
    %v91 = vsel %vm75, 1, 0
    %v92 = vsel %vm76, 1, 0
    %v93 = vsel %vm77, 1, 0
    %v94 = vsel %vm78, 1, 0
    %v95 = vsel %vm79, 1, 0
    %v96 = vsel %vm80, 1, 0
    %v97 = vsel %vm81, 1, 0
    %v98 = vsel %vm82, 1, 0
    %v99 = vsel %vm83, 1, 0
    %v100 = vsel %vm84, 1, 0
    %v101 = vsel %vm85, 1, 0
    %v102 = vsel %vm86, 1, 0
    %v103 = vsel %vm87, 1, 0
    %v104 = vsel %vm88, 1, 0
    %v105 = vsel %vm89, 1, 0
    %v106 = vcvt.s32.f32 %v90
    %v107 = vcvt.s32.f32 %v91
    %v108 = vcvt.s32.f32 %v92
    %v109 = vcvt.s32.f32 %v93
    %v110 = vcvt.s32.f32 %v94
    %v111 = vcvt.s32.f32 %v95
    %v112 = vcvt.s32.f32 %v96
    %v113 = vcvt.s32.f32 %v97
    %v114 = vcvt.s32.f32 %v98
    %v115 = vcvt.s32.f32 %v99
    %v116 = vcvt.s32.f32 %v100
    %v117 = vcvt.s32.f32 %v101
    %v118 = vcvt.s32.f32 %v102
    %v119 = vcvt.s32.f32 %v103
    %v120 = vcvt.s32.f32 %v104
    %v121 = vcvt.s32.f32 %v105
    %v122 = vld [vmem:[#allocation2] sm:$0xf]
    %123 = vmatprep.subr.mxu0 0.0
    %v124 = vand.u32 %v106, 4294901760
    %125 = vmatpush1.msra.mxu0 %v124
    %126 = vmatprep.subr.mxu0 0.0
    %v127 = vand.u32 %v107, 4294901760
    %128 = vmatpush1.msra.mxu0 %v127
    %129 = vmatprep.subr.mxu0 0.0
    %v130 = vand.u32 %v108, 4294901760
    %131 = vmatpush1.msra.mxu0 %v130
    %132 = vmatprep.subr.mxu0 0.0
    %v133 = vand.u32 %v109, 4294901760
    %134 = vmatpush1.msra.mxu0 %v133
    %135 = vmatprep.subr.mxu0 0.0
    %v136 = vand.u32 %v110, 4294901760
    %137 = vmatpush1.msra.mxu0 %v136
    %138 = vmatprep.subr.mxu0 0.0
    %v139 = vand.u32 %v111, 4294901760
    %140 = vmatpush1.msra.mxu0 %v139
    %141 = vmatprep.subr.mxu0 0.0
    %v142 = vand.u32 %v112, 4294901760
    %143 = vmatpush1.msra.mxu0 %v142
    %144 = vmatprep.subr.mxu0 0.0
    %v145 = vand.u32 %v113, 4294901760
    %146 = vmatpush1.msra.mxu0 %v145
    %147 = vmatprep.subr.mxu0 0.0
    %v148 = vand.u32 %v114, 4294901760
    %149 = vmatpush1.msra.mxu0 %v148
    %150 = vmatprep.subr.mxu0 0.0
    %v151 = vand.u32 %v115, 4294901760
    %152 = vmatpush1.msra.mxu0 %v151
    %153 = vmatprep.subr.mxu0 0.0
    %v154 = vand.u32 %v116, 4294901760
    %155 = vmatpush1.msra.mxu0 %v154
    %156 = vmatprep.subr.mxu0 0.0
    %v157 = vand.u32 %v117, 4294901760
    %158 = vmatpush1.msra.mxu0 %v157
    %159 = vmatprep.subr.mxu0 0.0
    %v160 = vand.u32 %v118, 4294901760
    %161 = vmatpush1.msra.mxu0 %v160
    %162 = vmatprep.subr.mxu0 0.0
    %v163 = vand.u32 %v119, 4294901760
    %164 = vmatpush1.msra.mxu0 %v163
    %165 = vmatprep.subr.mxu0 0.0
    %v166 = vand.u32 %v120, 4294901760
    %167 = vmatpush1.msra.mxu0 %v166
    %168 = vmatprep.subr.mxu0 0.0
    %v169 = vand.u32 %v121, 4294901760
    %170 = vmatpush1.msra.mxu0 %v169
    %171 = vmatprep.subr.mxu0 0.0
    %172 = vmatpush1.msra.mxu0 0.0
    %173 = vmatprep.subr.mxu0 0.0
    %174 = vmatpush1.msra.mxu0 0.0
    %175 = vmatprep.subr.mxu0 0.0
    %176 = vmatpush1.msra.mxu0 0.0
    %177 = vmatprep.subr.mxu0 0.0
    %178 = vmatpush1.msra.mxu0 0.0
    %179 = vmatprep.subr.mxu0 0.0
    %180 = vmatpush1.msra.mxu0 0.0
    %181 = vmatprep.subr.mxu0 0.0
    %182 = vmatpush1.msra.mxu0 0.0
    %183 = vmatprep.subr.mxu0 0.0
    %184 = vmatpush1.msra.mxu0 0.0
    %185 = vmatprep.subr.mxu0 0.0
    %186 = vmatpush1.msra.mxu0 0.0
    %187 = vmatprep.subr.mxu0 0.0
    %188 = vmatpush1.msra.mxu0 0.0
    %189 = vmatprep.subr.mxu0 0.0
    %190 = vmatpush1.msra.mxu0 0.0
    %191 = vmatprep.subr.mxu0 0.0
    %192 = vmatpush1.msra.mxu0 0.0
    %193 = vmatprep.subr.mxu0 0.0
    %194 = vmatpush1.msra.mxu0 0.0
    %195 = vmatprep.subr.mxu0 0.0
    %196 = vmatpush1.msra.mxu0 0.0
    %197 = vmatprep.subr.mxu0 0.0
    %198 = vmatpush1.msra.mxu0 0.0
    %199 = vmatprep.subr.mxu0 0.0
    %200 = vmatpush1.msra.mxu0 0.0
    %201 = vmatprep.subr.mxu0 0.0
    %202 = vmatpush1.msra.mxu0 0.0
    %203 = vmatprep.mubr.f32.mxu0 0.0
    %v204 = vand.u32 %v122, 4294901760
    %v205 = vsub.f32 %v122, %v204
    %v206 = vand.u32 %v205, 4294901760
    %v207 = vsub.f32 %v205, %v206
    %v208 = vand.u32 %v207, 4294901760
    %209 = vmatmul.mubr.f32.gmra.mrb[0].mxu0 %v208
    %v210 = vpop.f32.mrb[0].mxu0
    %v211 = vadd.f32 0.0, %v210
    %v212 = vpop.f32.mrb[0].mxu0
    %213 = vdwg.mxu0
    %214 = vmatprep.subr.mxu0 0.0
    %v215 = vand.u32 %v106, 4294901760
    %v216 = vsub.f32 %v106, %v215
    %v217 = vand.u32 %v216, 4294901760
    %v218 = vsub.f32 %v216, %v217
    %v219 = vand.u32 %v218, 4294901760
    %220 = vmatpush1.msra.mxu0 %v219
    %221 = vmatprep.subr.mxu0 0.0
    %v222 = vand.u32 %v107, 4294901760
    %v223 = vsub.f32 %v107, %v222
    %v224 = vand.u32 %v223, 4294901760
    %v225 = vsub.f32 %v223, %v224
    %v226 = vand.u32 %v225, 4294901760
    %227 = vmatpush1.msra.mxu0 %v226
    %228 = vmatprep.subr.mxu0 0.0
    %v229 = vand.u32 %v108, 4294901760
    %v230 = vsub.f32 %v108, %v229
    %v231 = vand.u32 %v230, 4294901760
    %v232 = vsub.f32 %v230, %v231
    %v233 = vand.u32 %v232, 4294901760
    %234 = vmatpush1.msra.mxu0 %v233
    %235 = vmatprep.subr.mxu0 0.0
    %v236 = vand.u32 %v109, 4294901760
    %v237 = vsub.f32 %v109, %v236
    %v238 = vand.u32 %v237, 4294901760
    %v239 = vsub.f32 %v237, %v238
    %v240 = vand.u32 %v239, 4294901760
    %241 = vmatpush1.msra.mxu0 %v240
    %242 = vmatprep.subr.mxu0 0.0
    %v243 = vand.u32 %v110, 4294901760
    %v244 = vsub.f32 %v110, %v243
    %v245 = vand.u32 %v244, 4294901760
    %v246 = vsub.f32 %v244, %v245
    %v247 = vand.u32 %v246, 4294901760
    %248 = vmatpush1.msra.mxu0 %v247
    %249 = vmatprep.subr.mxu0 0.0
    %v250 = vand.u32 %v111, 4294901760
    %v251 = vsub.f32 %v111, %v250
    %v252 = vand.u32 %v251, 4294901760
    %v253 = vsub.f32 %v251, %v252
    %v254 = vand.u32 %v253, 4294901760
    %255 = vmatpush1.msra.mxu0 %v254
    %256 = vmatprep.subr.mxu0 0.0
    %v257 = vand.u32 %v112, 4294901760
    %v258 = vsub.f32 %v112, %v257
    %v259 = vand.u32 %v258, 4294901760
    %v260 = vsub.f32 %v258, %v259
    %v261 = vand.u32 %v260, 4294901760
    %262 = vmatpush1.msra.mxu0 %v261
    %263 = vmatprep.subr.mxu0 0.0
    %v264 = vand.u32 %v113, 4294901760
    %v265 = vsub.f32 %v113, %v264
    %v266 = vand.u32 %v265, 4294901760
    %v267 = vsub.f32 %v265, %v266
    %v268 = vand.u32 %v267, 4294901760
    %269 = vmatpush1.msra.mxu0 %v268
    %270 = vmatprep.subr.mxu0 0.0
    %v271 = vand.u32 %v114, 4294901760
    %v272 = vsub.f32 %v114, %v271
    %v273 = vand.u32 %v272, 4294901760
    %v274 = vsub.f32 %v272, %v273
    %v275 = vand.u32 %v274, 4294901760
    %276 = vmatpush1.msra.mxu0 %v275
    %277 = vmatprep.subr.mxu0 0.0
    %v278 = vand.u32 %v115, 4294901760
    %v279 = vsub.f32 %v115, %v278
    %v280 = vand.u32 %v279, 4294901760
    %v281 = vsub.f32 %v279, %v280
    %v282 = vand.u32 %v281, 4294901760
    %283 = vmatpush1.msra.mxu0 %v282
    %284 = vmatprep.subr.mxu0 0.0
    %v285 = vand.u32 %v116, 4294901760
    %v286 = vsub.f32 %v116, %v285
    %v287 = vand.u32 %v286, 4294901760
    %v288 = vsub.f32 %v286, %v287
    %v289 = vand.u32 %v288, 4294901760
    %290 = vmatpush1.msra.mxu0 %v289
    %291 = vmatprep.subr.mxu0 0.0
    %v292 = vand.u32 %v117, 4294901760
    %v293 = vsub.f32 %v117, %v292
    %v294 = vand.u32 %v293, 4294901760
    %v295 = vsub.f32 %v293, %v294
    %v296 = vand.u32 %v295, 4294901760
    %297 = vmatpush1.msra.mxu0 %v296
    %298 = vmatprep.subr.mxu0 0.0
    %v299 = vand.u32 %v118, 4294901760
    %v300 = vsub.f32 %v118, %v299
    %v301 = vand.u32 %v300, 4294901760
    %v302 = vsub.f32 %v300, %v301
    %v303 = vand.u32 %v302, 4294901760
    %304 = vmatpush1.msra.mxu0 %v303
    %305 = vmatprep.subr.mxu0 0.0
    %v306 = vand.u32 %v119, 4294901760
    %v307 = vsub.f32 %v119, %v306
    %v308 = vand.u32 %v307, 4294901760
    %v309 = vsub.f32 %v307, %v308
    %v310 = vand.u32 %v309, 4294901760
    %311 = vmatpush1.msra.mxu0 %v310
    %312 = vmatprep.subr.mxu0 0.0
    %v313 = vand.u32 %v120, 4294901760
    %v314 = vsub.f32 %v120, %v313
    %v315 = vand.u32 %v314, 4294901760
    %v316 = vsub.f32 %v314, %v315
    %v317 = vand.u32 %v316, 4294901760
    %318 = vmatpush1.msra.mxu0 %v317
    %319 = vmatprep.subr.mxu0 0.0
    %v320 = vand.u32 %v121, 4294901760
    %v321 = vsub.f32 %v121, %v320
    %v322 = vand.u32 %v321, 4294901760
    %v323 = vsub.f32 %v321, %v322
    %v324 = vand.u32 %v323, 4294901760
    %325 = vmatpush1.msra.mxu0 %v324
    %326 = vmatprep.subr.mxu0 0.0
    %327 = vmatpush1.msra.mxu0 0.0
    %328 = vmatprep.subr.mxu0 0.0
    %329 = vmatpush1.msra.mxu0 0.0
    %330 = vmatprep.subr.mxu0 0.0
    %331 = vmatpush1.msra.mxu0 0.0
    %332 = vmatprep.subr.mxu0 0.0
    %333 = vmatpush1.msra.mxu0 0.0
    %334 = vmatprep.subr.mxu0 0.0
    %335 = vmatpush1.msra.mxu0 0.0
    %336 = vmatprep.subr.mxu0 0.0
    %337 = vmatpush1.msra.mxu0 0.0
    %338 = vmatprep.subr.mxu0 0.0
    %339 = vmatpush1.msra.mxu0 0.0
    %340 = vmatprep.subr.mxu0 0.0
    %341 = vmatpush1.msra.mxu0 0.0
    %342 = vmatprep.subr.mxu0 0.0
    %343 = vmatpush1.msra.mxu0 0.0
    %344 = vmatprep.subr.mxu0 0.0
    %345 = vmatpush1.msra.mxu0 0.0
    %346 = vmatprep.subr.mxu0 0.0
    %347 = vmatpush1.msra.mxu0 0.0
    %348 = vmatprep.subr.mxu0 0.0
    %349 = vmatpush1.msra.mxu0 0.0
    %350 = vmatprep.subr.mxu0 0.0
    %351 = vmatpush1.msra.mxu0 0.0
    %352 = vmatprep.subr.mxu0 0.0
    %353 = vmatpush1.msra.mxu0 0.0
    %354 = vmatprep.subr.mxu0 0.0
    %355 = vmatpush1.msra.mxu0 0.0
    %356 = vmatprep.subr.mxu0 0.0
    %357 = vmatpush1.msra.mxu0 0.0
    %358 = vmatprep.mubr.f32.mxu0 0.0
    %v359 = vand.u32 %v122, 4294901760
    %360 = vmatmul.mubr.f32.gmra.mrb[0].mxu0 %v359
    %v361 = vpop.f32.mrb[0].mxu0
    %v362 = vadd.f32 %v211, %v361
    %v363 = vpop.f32.mrb[0].mxu0
    %364 = vdwg.mxu0
    %365 = vmatprep.subr.mxu0 0.0
    %v366 = vand.u32 %v106, 4294901760
    %v367 = vsub.f32 %v106, %v366
    %368 = vmatpush1.msra.mxu0 %v367
    %369 = vmatprep.subr.mxu0 0.0
    %v370 = vand.u32 %v107, 4294901760
    %v371 = vsub.f32 %v107, %v370
    %372 = vmatpush1.msra.mxu0 %v371
    %373 = vmatprep.subr.mxu0 0.0
    %v374 = vand.u32 %v108, 4294901760
    %v375 = vsub.f32 %v108, %v374
    %376 = vmatpush1.msra.mxu0 %v375
    %377 = vmatprep.subr.mxu0 0.0
    %v378 = vand.u32 %v109, 4294901760
    %v379 = vsub.f32 %v109, %v378
    %380 = vmatpush1.msra.mxu0 %v379
    %381 = vmatprep.subr.mxu0 0.0
    %v382 = vand.u32 %v110, 4294901760
    %v383 = vsub.f32 %v110, %v382
    %384 = vmatpush1.msra.mxu0 %v383
    %385 = vmatprep.subr.mxu0 0.0
    %v386 = vand.u32 %v111, 4294901760
    %v387 = vsub.f32 %v111, %v386
    %388 = vmatpush1.msra.mxu0 %v387
    %389 = vmatprep.subr.mxu0 0.0
    %v390 = vand.u32 %v112, 4294901760
    %v391 = vsub.f32 %v112, %v390
    %392 = vmatpush1.msra.mxu0 %v391
    %393 = vmatprep.subr.mxu0 0.0
    %v394 = vand.u32 %v113, 4294901760
    %v395 = vsub.f32 %v113, %v394
    %396 = vmatpush1.msra.mxu0 %v395
    %397 = vmatprep.subr.mxu0 0.0
    %v398 = vand.u32 %v114, 4294901760
    %v399 = vsub.f32 %v114, %v398
    %400 = vmatpush1.msra.mxu0 %v399
    %401 = vmatprep.subr.mxu0 0.0
    %v402 = vand.u32 %v115, 4294901760
    %v403 = vsub.f32 %v115, %v402
    %404 = vmatpush1.msra.mxu0 %v403
    %405 = vmatprep.subr.mxu0 0.0
    %v406 = vand.u32 %v116, 4294901760
    %v407 = vsub.f32 %v116, %v406
    %408 = vmatpush1.msra.mxu0 %v407
    %409 = vmatprep.subr.mxu0 0.0
    %v410 = vand.u32 %v117, 4294901760
    %v411 = vsub.f32 %v117, %v410
    %412 = vmatpush1.msra.mxu0 %v411
    %413 = vmatprep.subr.mxu0 0.0
    %v414 = vand.u32 %v118, 4294901760
    %v415 = vsub.f32 %v118, %v414
    %416 = vmatpush1.msra.mxu0 %v415
    %417 = vmatprep.subr.mxu0 0.0
    %v418 = vand.u32 %v119, 4294901760
    %v419 = vsub.f32 %v119, %v418
    %420 = vmatpush1.msra.mxu0 %v419
    %421 = vmatprep.subr.mxu0 0.0
    %v422 = vand.u32 %v120, 4294901760
    %v423 = vsub.f32 %v120, %v422
    %424 = vmatpush1.msra.mxu0 %v423
    %425 = vmatprep.subr.mxu0 0.0
    %v426 = vand.u32 %v121, 4294901760
    %v427 = vsub.f32 %v121, %v426
    %428 = vmatpush1.msra.mxu0 %v427
    %429 = vmatprep.subr.mxu0 0.0
    %430 = vmatpush1.msra.mxu0 0.0
    %431 = vmatprep.subr.mxu0 0.0
    %432 = vmatpush1.msra.mxu0 0.0
    %433 = vmatprep.subr.mxu0 0.0
    %434 = vmatpush1.msra.mxu0 0.0
    %435 = vmatprep.subr.mxu0 0.0
    %436 = vmatpush1.msra.mxu0 0.0
    %437 = vmatprep.subr.mxu0 0.0
    %438 = vmatpush1.msra.mxu0 0.0
    %439 = vmatprep.subr.mxu0 0.0
    %440 = vmatpush1.msra.mxu0 0.0
    %441 = vmatprep.subr.mxu0 0.0
    %442 = vmatpush1.msra.mxu0 0.0
    %443 = vmatprep.subr.mxu0 0.0
    %444 = vmatpush1.msra.mxu0 0.0
    %445 = vmatprep.subr.mxu0 0.0
    %446 = vmatpush1.msra.mxu0 0.0
    %447 = vmatprep.subr.mxu0 0.0
    %448 = vmatpush1.msra.mxu0 0.0
    %449 = vmatprep.subr.mxu0 0.0
    %450 = vmatpush1.msra.mxu0 0.0
    %451 = vmatprep.subr.mxu0 0.0
    %452 = vmatpush1.msra.mxu0 0.0
    %453 = vmatprep.subr.mxu0 0.0
    %454 = vmatpush1.msra.mxu0 0.0
    %455 = vmatprep.subr.mxu0 0.0
    %456 = vmatpush1.msra.mxu0 0.0
    %457 = vmatprep.subr.mxu0 0.0
    %458 = vmatpush1.msra.mxu0 0.0
    %459 = vmatprep.subr.mxu0 0.0
    %460 = vmatpush1.msra.mxu0 0.0
    %461 = vmatprep.mubr.f32.mxu0 0.0
    %v462 = vand.u32 %v122, 4294901760
    %v463 = vsub.f32 %v122, %v462
    %464 = vmatmul.mubr.f32.gmra.mrb[0].mxu0 %v463
    %v465 = vpop.f32.mrb[0].mxu0
    %v466 = vadd.f32 %v362, %v465
    %v467 = vpop.f32.mrb[0].mxu0
    %468 = vdwg.mxu0
    %469 = vmatprep.subr.mxu0 0.0
    %v470 = vand.u32 %v106, 4294901760
    %471 = vmatpush1.msra.mxu0 %v470
    %472 = vmatprep.subr.mxu0 0.0
    %v473 = vand.u32 %v107, 4294901760
    %474 = vmatpush1.msra.mxu0 %v473
    %475 = vmatprep.subr.mxu0 0.0
    %v476 = vand.u32 %v108, 4294901760
    %477 = vmatpush1.msra.mxu0 %v476
    %478 = vmatprep.subr.mxu0 0.0
    %v479 = vand.u32 %v109, 4294901760
    %480 = vmatpush1.msra.mxu0 %v479
    %481 = vmatprep.subr.mxu0 0.0
    %v482 = vand.u32 %v110, 4294901760
    %483 = vmatpush1.msra.mxu0 %v482
    %484 = vmatprep.subr.mxu0 0.0
    %v485 = vand.u32 %v111, 4294901760
    %486 = vmatpush1.msra.mxu0 %v485
    %487 = vmatprep.subr.mxu0 0.0
    %v488 = vand.u32 %v112, 4294901760
    %489 = vmatpush1.msra.mxu0 %v488
    %490 = vmatprep.subr.mxu0 0.0
    %v491 = vand.u32 %v113, 4294901760
    %492 = vmatpush1.msra.mxu0 %v491
    %493 = vmatprep.subr.mxu0 0.0
    %v494 = vand.u32 %v114, 4294901760
    %495 = vmatpush1.msra.mxu0 %v494
    %496 = vmatprep.subr.mxu0 0.0
    %v497 = vand.u32 %v115, 4294901760
    %498 = vmatpush1.msra.mxu0 %v497
    %499 = vmatprep.subr.mxu0 0.0
    %v500 = vand.u32 %v116, 4294901760
    %501 = vmatpush1.msra.mxu0 %v500
    %502 = vmatprep.subr.mxu0 0.0
    %v503 = vand.u32 %v117, 4294901760
    %504 = vmatpush1.msra.mxu0 %v503
    %505 = vmatprep.subr.mxu0 0.0
    %v506 = vand.u32 %v118, 4294901760
    %507 = vmatpush1.msra.mxu0 %v506
    %508 = vmatprep.subr.mxu0 0.0
    %v509 = vand.u32 %v119, 4294901760
    %510 = vmatpush1.msra.mxu0 %v509
    %511 = vmatprep.subr.mxu0 0.0
    %v512 = vand.u32 %v120, 4294901760
    %513 = vmatpush1.msra.mxu0 %v512
    %514 = vmatprep.subr.mxu0 0.0
    %v515 = vand.u32 %v121, 4294901760
    %516 = vmatpush1.msra.mxu0 %v515
    %517 = vmatprep.subr.mxu0 0.0
    %518 = vmatpush1.msra.mxu0 0.0
    %519 = vmatprep.subr.mxu0 0.0
    %520 = vmatpush1.msra.mxu0 0.0
    %521 = vmatprep.subr.mxu0 0.0
    %522 = vmatpush1.msra.mxu0 0.0
    %523 = vmatprep.subr.mxu0 0.0
    %524 = vmatpush1.msra.mxu0 0.0
    %525 = vmatprep.subr.mxu0 0.0
    %526 = vmatpush1.msra.mxu0 0.0
    %527 = vmatprep.subr.mxu0 0.0
    %528 = vmatpush1.msra.mxu0 0.0
    %529 = vmatprep.subr.mxu0 0.0
    %530 = vmatpush1.msra.mxu0 0.0
    %531 = vmatprep.subr.mxu0 0.0
    %532 = vmatpush1.msra.mxu0 0.0
    %533 = vmatprep.subr.mxu0 0.0
    %534 = vmatpush1.msra.mxu0 0.0
    %535 = vmatprep.subr.mxu0 0.0
    %536 = vmatpush1.msra.mxu0 0.0
    %537 = vmatprep.subr.mxu0 0.0
    %538 = vmatpush1.msra.mxu0 0.0
    %539 = vmatprep.subr.mxu0 0.0
    %540 = vmatpush1.msra.mxu0 0.0
    %541 = vmatprep.subr.mxu0 0.0
    %542 = vmatpush1.msra.mxu0 0.0
    %543 = vmatprep.subr.mxu0 0.0
    %544 = vmatpush1.msra.mxu0 0.0
    %545 = vmatprep.subr.mxu0 0.0
    %546 = vmatpush1.msra.mxu0 0.0
    %547 = vmatprep.subr.mxu0 0.0
    %548 = vmatpush1.msra.mxu0 0.0
    %549 = vmatprep.mubr.f32.mxu0 0.0
    %v550 = vand.u32 %v122, 4294901760
    %v551 = vsub.f32 %v122, %v550
    %v552 = vand.u32 %v551, 4294901760
    %553 = vmatmul.mubr.f32.gmra.mrb[0].mxu0 %v552
    %v554 = vpop.f32.mrb[0].mxu0
    %v555 = vadd.f32 %v466, %v554
    %v556 = vpop.f32.mrb[0].mxu0
    %557 = vdwg.mxu0
    %558 = vmatprep.subr.mxu0 0.0
    %v559 = vand.u32 %v106, 4294901760
    %v560 = vsub.f32 %v106, %v559
    %v561 = vand.u32 %v560, 4294901760
    %562 = vmatpush1.msra.mxu0 %v561
    %563 = vmatprep.subr.mxu0 0.0
    %v564 = vand.u32 %v107, 4294901760
    %v565 = vsub.f32 %v107, %v564
    %v566 = vand.u32 %v565, 4294901760
    %567 = vmatpush1.msra.mxu0 %v566
    %568 = vmatprep.subr.mxu0 0.0
    %v569 = vand.u32 %v108, 4294901760
    %v570 = vsub.f32 %v108, %v569
    %v571 = vand.u32 %v570, 4294901760
    %572 = vmatpush1.msra.mxu0 %v571
    %573 = vmatprep.subr.mxu0 0.0
    %v574 = vand.u32 %v109, 4294901760
    %v575 = vsub.f32 %v109, %v574
    %v576 = vand.u32 %v575, 4294901760
    %577 = vmatpush1.msra.mxu0 %v576
    %578 = vmatprep.subr.mxu0 0.0
    %v579 = vand.u32 %v110, 4294901760
    %v580 = vsub.f32 %v110, %v579
    %v581 = vand.u32 %v580, 4294901760
    %582 = vmatpush1.msra.mxu0 %v581
    %583 = vmatprep.subr.mxu0 0.0
    %v584 = vand.u32 %v111, 4294901760
    %v585 = vsub.f32 %v111, %v584
    %v586 = vand.u32 %v585, 4294901760
    %587 = vmatpush1.msra.mxu0 %v586
    %588 = vmatprep.subr.mxu0 0.0
    %v589 = vand.u32 %v112, 4294901760
    %v590 = vsub.f32 %v112, %v589
    %v591 = vand.u32 %v590, 4294901760
    %592 = vmatpush1.msra.mxu0 %v591
    %593 = vmatprep.subr.mxu0 0.0
    %v594 = vand.u32 %v113, 4294901760
    %v595 = vsub.f32 %v113, %v594
    %v596 = vand.u32 %v595, 4294901760
    %597 = vmatpush1.msra.mxu0 %v596
    %598 = vmatprep.subr.mxu0 0.0
    %v599 = vand.u32 %v114, 4294901760
    %v600 = vsub.f32 %v114, %v599
    %v601 = vand.u32 %v600, 4294901760
    %602 = vmatpush1.msra.mxu0 %v601
    %603 = vmatprep.subr.mxu0 0.0
    %v604 = vand.u32 %v115, 4294901760
    %v605 = vsub.f32 %v115, %v604
    %v606 = vand.u32 %v605, 4294901760
    %607 = vmatpush1.msra.mxu0 %v606
    %608 = vmatprep.subr.mxu0 0.0
    %v609 = vand.u32 %v116, 4294901760
    %v610 = vsub.f32 %v116, %v609
    %v611 = vand.u32 %v610, 4294901760
    %612 = vmatpush1.msra.mxu0 %v611
    %613 = vmatprep.subr.mxu0 0.0
    %v614 = vand.u32 %v117, 4294901760
    %v615 = vsub.f32 %v117, %v614
    %v616 = vand.u32 %v615, 4294901760
    %617 = vmatpush1.msra.mxu0 %v616
    %618 = vmatprep.subr.mxu0 0.0
    %v619 = vand.u32 %v118, 4294901760
    %v620 = vsub.f32 %v118, %v619
    %v621 = vand.u32 %v620, 4294901760
    %622 = vmatpush1.msra.mxu0 %v621
    %623 = vmatprep.subr.mxu0 0.0
    %v624 = vand.u32 %v119, 4294901760
    %v625 = vsub.f32 %v119, %v624
    %v626 = vand.u32 %v625, 4294901760
    %627 = vmatpush1.msra.mxu0 %v626
    %628 = vmatprep.subr.mxu0 0.0
    %v629 = vand.u32 %v120, 4294901760
    %v630 = vsub.f32 %v120, %v629
    %v631 = vand.u32 %v630, 4294901760
    %632 = vmatpush1.msra.mxu0 %v631
    %633 = vmatprep.subr.mxu0 0.0
    %v634 = vand.u32 %v121, 4294901760
    %v635 = vsub.f32 %v121, %v634
    %v636 = vand.u32 %v635, 4294901760
    %637 = vmatpush1.msra.mxu0 %v636
    %638 = vmatprep.subr.mxu0 0.0
    %639 = vmatpush1.msra.mxu0 0.0
    %640 = vmatprep.subr.mxu0 0.0
    %641 = vmatpush1.msra.mxu0 0.0
    %642 = vmatprep.subr.mxu0 0.0
    %643 = vmatpush1.msra.mxu0 0.0
    %644 = vmatprep.subr.mxu0 0.0
    %645 = vmatpush1.msra.mxu0 0.0
    %646 = vmatprep.subr.mxu0 0.0
    %647 = vmatpush1.msra.mxu0 0.0
    %648 = vmatprep.subr.mxu0 0.0
    %649 = vmatpush1.msra.mxu0 0.0
    %650 = vmatprep.subr.mxu0 0.0
    %651 = vmatpush1.msra.mxu0 0.0
    %652 = vmatprep.subr.mxu0 0.0
    %653 = vmatpush1.msra.mxu0 0.0
    %654 = vmatprep.subr.mxu0 0.0
    %655 = vmatpush1.msra.mxu0 0.0
    %656 = vmatprep.subr.mxu0 0.0
    %657 = vmatpush1.msra.mxu0 0.0
    %658 = vmatprep.subr.mxu0 0.0
    %659 = vmatpush1.msra.mxu0 0.0
    %660 = vmatprep.subr.mxu0 0.0
    %661 = vmatpush1.msra.mxu0 0.0
    %662 = vmatprep.subr.mxu0 0.0
    %663 = vmatpush1.msra.mxu0 0.0
    %664 = vmatprep.subr.mxu0 0.0
    %665 = vmatpush1.msra.mxu0 0.0
    %666 = vmatprep.subr.mxu0 0.0
    %667 = vmatpush1.msra.mxu0 0.0
    %668 = vmatprep.subr.mxu0 0.0
    %669 = vmatpush1.msra.mxu0 0.0
    %670 = vmatprep.mubr.f32.mxu0 0.0
    %v671 = vand.u32 %v122, 4294901760
    %672 = vmatmul.mubr.f32.gmra.mrb[0].mxu0 %v671
    %v673 = vpop.f32.mrb[0].mxu0
    %v674 = vadd.f32 %v555, %v673
    %v675 = vpop.f32.mrb[0].mxu0
    %676 = vdwg.mxu0
    %677 = vmatprep.subr.mxu0 0.0
    %v678 = vand.u32 %v106, 4294901760
    %679 = vmatpush1.msra.mxu0 %v678
    %680 = vmatprep.subr.mxu0 0.0
    %v681 = vand.u32 %v107, 4294901760
    %682 = vmatpush1.msra.mxu0 %v681
    %683 = vmatprep.subr.mxu0 0.0
    %v684 = vand.u32 %v108, 4294901760
    %685 = vmatpush1.msra.mxu0 %v684
    %686 = vmatprep.subr.mxu0 0.0
    %v687 = vand.u32 %v109, 4294901760
    %688 = vmatpush1.msra.mxu0 %v687
    %689 = vmatprep.subr.mxu0 0.0
    %v690 = vand.u32 %v110, 4294901760
    %691 = vmatpush1.msra.mxu0 %v690
    %692 = vmatprep.subr.mxu0 0.0
    %v693 = vand.u32 %v111, 4294901760
    %694 = vmatpush1.msra.mxu0 %v693
    %695 = vmatprep.subr.mxu0 0.0
    %v696 = vand.u32 %v112, 4294901760
    %697 = vmatpush1.msra.mxu0 %v696
    %698 = vmatprep.subr.mxu0 0.0
    %v699 = vand.u32 %v113, 4294901760
    %700 = vmatpush1.msra.mxu0 %v699
    %701 = vmatprep.subr.mxu0 0.0
    %v702 = vand.u32 %v114, 4294901760
    %703 = vmatpush1.msra.mxu0 %v702
    %704 = vmatprep.subr.mxu0 0.0
    %v705 = vand.u32 %v115, 4294901760
    %706 = vmatpush1.msra.mxu0 %v705
    %707 = vmatprep.subr.mxu0 0.0
    %v708 = vand.u32 %v116, 4294901760
    %709 = vmatpush1.msra.mxu0 %v708
    %710 = vmatprep.subr.mxu0 0.0
    %v711 = vand.u32 %v117, 4294901760
    %712 = vmatpush1.msra.mxu0 %v711
    %713 = vmatprep.subr.mxu0 0.0
    %v714 = vand.u32 %v118, 4294901760
    %715 = vmatpush1.msra.mxu0 %v714
    %716 = vmatprep.subr.mxu0 0.0
    %v717 = vand.u32 %v119, 4294901760
    %718 = vmatpush1.msra.mxu0 %v717
    %719 = vmatprep.subr.mxu0 0.0
    %v720 = vand.u32 %v120, 4294901760
    %721 = vmatpush1.msra.mxu0 %v720
    %722 = vmatprep.subr.mxu0 0.0
    %v723 = vand.u32 %v121, 4294901760
    %724 = vmatpush1.msra.mxu0 %v723
    %725 = vmatprep.subr.mxu0 0.0
    %726 = vmatpush1.msra.mxu0 0.0
    %727 = vmatprep.subr.mxu0 0.0
    %728 = vmatpush1.msra.mxu0 0.0
    %729 = vmatprep.subr.mxu0 0.0
    %730 = vmatpush1.msra.mxu0 0.0
    %731 = vmatprep.subr.mxu0 0.0
    %732 = vmatpush1.msra.mxu0 0.0
    %733 = vmatprep.subr.mxu0 0.0
    %734 = vmatpush1.msra.mxu0 0.0
    %735 = vmatprep.subr.mxu0 0.0
    %736 = vmatpush1.msra.mxu0 0.0
    %737 = vmatprep.subr.mxu0 0.0
    %738 = vmatpush1.msra.mxu0 0.0
    %739 = vmatprep.subr.mxu0 0.0
    %740 = vmatpush1.msra.mxu0 0.0
    %741 = vmatprep.subr.mxu0 0.0
    %742 = vmatpush1.msra.mxu0 0.0
    %743 = vmatprep.subr.mxu0 0.0
    %744 = vmatpush1.msra.mxu0 0.0
    %745 = vmatprep.subr.mxu0 0.0
    %746 = vmatpush1.msra.mxu0 0.0
    %747 = vmatprep.subr.mxu0 0.0
    %748 = vmatpush1.msra.mxu0 0.0
    %749 = vmatprep.subr.mxu0 0.0
    %750 = vmatpush1.msra.mxu0 0.0
    %751 = vmatprep.subr.mxu0 0.0
    %752 = vmatpush1.msra.mxu0 0.0
    %753 = vmatprep.subr.mxu0 0.0
    %754 = vmatpush1.msra.mxu0 0.0
    %755 = vmatprep.subr.mxu0 0.0
    %756 = vmatpush1.msra.mxu0 0.0
    %757 = vmatprep.mubr.f32.mxu0 0.0
    %v758 = vand.u32 %v122, 4294901760
    %759 = vmatmul.mubr.f32.gmra.mrb[0].mxu0 %v758
    %v760 = vpop.f32.mrb[0].mxu0
    %v761 = vadd.f32 %v674, %v760
    %v762 = vpop.f32.mrb[0].mxu0
    %763 = vdwg.mxu0
    %v764 = vmul.f32 %v761, 0.041666668
    %vm765 = vcmask 27648
    %766 = vst.msk [vmem:[#allocation5] sm:$0xf] %vm765, %v764
    // Predicated region
    $region10: #{tpu_custom_call.1} parent=1 // pred_check
      _
    $region11: #{tpu_custom_call.1} parent=1 // pred_check_branch
      %768 = sbr.rel (0) target = $region13
    $region12: #{tpu_custom_call.1} parent=1 // pred_region
      %s770 = ssub.s32 64, 64
      %771 = vsyncadd [#allocation4], %s770
      %s773 = sshll.u32 [#allocation5], 4
      %s774 = int_to_ptr.vmem [resolvable:$true] %s773
      %776 = dma.vmem_to_hbm [thread:$0]  %s774, 64, %s1, [#allocation4]
    $region13: #{tpu_custom_call.1} parent=1 // pred_fallthru
      _
    // Predicated region
    $region14: #{tpu_custom_call.1} parent=1 // pred_check
      _
    $region15: #{tpu_custom_call.1} parent=1 // pred_check_branch
      %778 = sbr.rel (0) target = $region17
    $region16: #{tpu_custom_call.1} parent=1 // pred_region
      %779 = dma.done [#allocation4], 64
    $region17: #{tpu_custom_call.1} parent=1 // pred_fallthru
      _
    %780 = vsyncpa [#allocation3], 1
    %781 = vsyncpa [#allocation4], 1

</llo_original>
